<compile_context>
chip_gen: v7x
topology: tpu7x:2x2x1
jax: 0.10.0
libtpu: 0.0.40
codegen_flags: <defaults>
</compile_context>

<pallas_src>
import functools

import jax
import jax.numpy as jnp
from jax import lax
from jax.experimental import pallas as pl
from jax.experimental.pallas import tpu as pltpu


_LANE = 128
_SUBLANE = 8
_VMEM_BLOCK_BUDGET = 32 * 1024 * 1024   # budget used when picking the batch tile
_VMEM_LIMIT_CAP = 48 * 1024 * 1024      # never request more scoped VMEM than this


def _round_up(x, m):
    return ((x + m - 1) // m) * m


def _padded_block_bytes(rows, cols, itemsize=4, buffers=2):
    # VMEM blocks live on (8, 128) tiles: the lane (last) dim pads to 128, sublanes to 8.
    return (_round_up(max(rows, 1), _SUBLANE)
            * _round_up(max(cols, 1), _LANE) * itemsize * buffers)


def _vmem_estimate(bb, obs_dim, h0, h1d, out_dim):
    total = 0
    total += _padded_block_bytes(bb, obs_dim)        # state tile (double-buffered)
    total += _padded_block_bytes(h0, obs_dim)        # w1 (resident)
    total += _padded_block_bytes(h0, 1)              # b1
    total += _padded_block_bytes(h1d, h0)            # w2
    total += _padded_block_bytes(h1d, 1)             # b2
    total += _padded_block_bytes(out_dim, h1d)       # w3
    total += _padded_block_bytes(out_dim, 1)         # b3
    total += _padded_block_bytes(out_dim, bb)        # merged (mu|std) output tile
    # headroom for in-kernel intermediates (h1/h2 mostly live in vregs but may spill)
    total += _padded_block_bytes(h0, bb, buffers=1)
    total += _padded_block_bytes(h1d, bb, buffers=1)
    return total


def _pick_block(batch, block_b, obs_dim, h0, h1d, out_dim):
    """Large tiles amortize the ~0.35us per-grid-step overhead; keep grid >= 2 whenever the
    batch allows so the 'parallel' axis shards across both v7x TensorCores; cap by a VMEM
    budget that accounts for lane-padding of the (bb, obs_dim) block."""
    if batch < 2 * _LANE:
        return batch                                 # single tile; full-dim block is always legal
    bb = min((max(block_b, _LANE) // _LANE) * _LANE,
             (batch // 2 // _LANE) * _LANE)          # <= floor(B/2) -> grid >= 2
    bb = max(bb, _LANE)
    while bb > _LANE and _vmem_estimate(bb, obs_dim, h0, h1d, out_dim) > _VMEM_BLOCK_BUDGET:
        bb = max(_LANE, (bb // 2 // _LANE) * _LANE)
    return bb


def _actornet_kernel(x_ref, w1_ref, b1_ref, w2_ref, b2_ref, w3_ref, b3_ref,
                     out_ref, *, action_dim, mm_dtype):
    # Feature-major compute: the batch dimension lives on the LANE axis of every intermediate
    # and of the output, so bias-add/ReLU touch few vregs and the single merged output store is
    # both sublane- and lane-dense.
    x = x_ref[...]                                                     # (bb, obs_dim)

    # h = relu(W1 @ x^T + b1): contraction on the last dim of both operands (q @ k.T form;
    # the transpose is on the RHS contraction, lowered natively by the MXU).
    h = lax.dot_general(w1_ref[...], x, (((1,), (1,)), ((), ())),
                        preferred_element_type=jnp.float32)            # (h0, bb)
    h = jnp.maximum(h + b1_ref[...], 0.0)
    h = h.astype(mm_dtype)                           # no-op in f32; keeps bf16 MXU native

    h = jnp.dot(w2_ref[...], h, preferred_element_type=jnp.float32)    # (h1d, bb)
    h = jnp.maximum(h + b2_ref[...], 0.0)
    h = h.astype(mm_dtype)

    out = jnp.dot(w3_ref[...], h, preferred_element_type=jnp.float32)  # (2*action_dim, bb)
    out = out + b3_ref[...]

    # Merged (mu | std) block: rows < action_dim are mu, rows >= action_dim are exp(log_std).
    # exp runs on the EUP (its own VLIW slot); the extra exp on the mu rows is discarded by the
    # select and cannot contaminate the kept rows.
    # TODO(synk): NormalParamExtractor is assumed to be a plain last-dim chunk into
    # (mu, log_std) followed by std = exp(log_std); if the original uses TorchRL's
    # biased-softplus scale mapping, replace the exp below accordingly.
    row = lax.broadcasted_iota(jnp.int32, out.shape, 0)
    out_ref[...] = jnp.where(row < action_dim, out, jnp.exp(out)).astype(out_ref.dtype)


@functools.partial(jax.jit, static_argnames=("block_b",))
def actornet_forward(state, params, *, block_b=8192):
    """state: (B, observation_dim) -> (mu, std), each (B, action_dim) float32.

    Weights stay in PyTorch's (out_features, in_features) layout; biases are stored (out, 1) so
    they broadcast over the lane (batch) axis inside the kernel.  If `state` is bf16 the three
    matmuls run native bf16 on the MXU with f32 accumulation; the wrapper never re-casts the
    state stream (that would add an un-hidden HBM pass)."""
    w1, b1, w2, b2, w3, b3 = params
    B, obs_dim = state.shape
    h0 = w1.shape[0]
    h1d = w2.shape[0]
    out_dim = w3.shape[0]
    action_dim = out_dim // 2

    # Matmul-operand dtype follows the state; weights are tiny, cast them once here (no-op f32).
    mm_dtype = state.dtype
    w1c, w2c, w3c = w1.astype(mm_dtype), w2.astype(mm_dtype), w3.astype(mm_dtype)

    bb = _pick_block(B, block_b, obs_dim, h0, h1d, out_dim)
    grid = (pl.cdiv(B, bb),)
    vmem_limit = int(min(max(_vmem_estimate(bb, obs_dim, h0, h1d, out_dim) + (8 << 20),
                             32 << 20),
                         _VMEM_LIMIT_CAP))

    in_specs = [
        pl.BlockSpec((bb, obs_dim), lambda i: (i, 0)),     # state batch tile
        pl.BlockSpec((h0, obs_dim), lambda i: (0, 0)),     # w1 (resident across the grid)
        pl.BlockSpec((h0, 1), lambda i: (0, 0)),           # b1
        pl.BlockSpec((h1d, h0), lambda i: (0, 0)),         # w2
        pl.BlockSpec((h1d, 1), lambda i: (0, 0)),          # b2
        pl.BlockSpec((out_dim, h1d), lambda i: (0, 0)),    # w3
        pl.BlockSpec((out_dim, 1), lambda i: (0, 0)),      # b3
    ]
    # Single merged feature-major output (2*action_dim, B): batch on lanes (lane-dense stores),
    # all sublanes used, one output DMA per grid step.
    out_specs = pl.BlockSpec((out_dim, bb), lambda i: (0, i))
    out_shape = jax.ShapeDtypeStruct((out_dim, B), jnp.float32)

    merged = pl.pallas_call(
        functools.partial(_actornet_kernel, action_dim=action_dim, mm_dtype=mm_dtype),
        out_shape=out_shape,
        grid=grid,
        in_specs=in_specs,
        out_specs=out_specs,
        compiler_params=pltpu.CompilerParams(
            dimension_semantics=("parallel",),
            vmem_limit_bytes=vmem_limit,
        ),
    )(state, w1c, b1, w2c, b2, w3c, b3)

    # One fused transpose+split back to the PyTorch (B, action_dim) convention.  This is the
    # only wrapper-side pass over the outputs; consumers that can accept the feature-major
    # (action_dim, B) layout should use `merged` directly and skip it.
    res = merged.T
    return res[:, :action_dim], res[:, action_dim:]


def init_actornet_params(key, observation_dim, action_dim, hidden_dims):
    """PyTorch nn.Linear-style init. Weights in (out_features, in_features) layout,
    biases stored as (out_features, 1) so they broadcast over the lane (batch) axis."""
    dims = [observation_dim, hidden_dims[0], hidden_dims[1], action_dim * 2]
    params = []
    for i in range(3):
        fan_in, fan_out = dims[i], dims[i + 1]
        key, kw, kb = jax.random.split(key, 3)
        bound = 1.0 / jnp.sqrt(fan_in)
        w = jax.random.uniform(kw, (fan_out, fan_in), jnp.float32, -bound, bound)
        b = jax.random.uniform(kb, (fan_out, 1), jnp.float32, -bound, bound)
        params += [w, b]
    return tuple(params)


def actornet_reference(state, params, action_dim):
    w1, b1, w2, b2, w3, b3 = params
    h = jnp.maximum(state @ w1.T + b1[:, 0], 0.0)
    h = jnp.maximum(h @ w2.T + b2[:, 0], 0.0)
    out = h @ w3.T + b3[:, 0]
    mu = out[:, :action_dim]
    std = jnp.exp(out[:, action_dim:])
    return mu, std


if __name__ == "__main__":
    key = jax.random.PRNGKey(0)
    observation_dim = 16
    action_dim = 4
    hidden_dims = [32, 32]

    k_params, k_s1, k_s2, k_s3 = jax.random.split(key, 4)
    params = init_actornet_params(k_params, observation_dim, action_dim, hidden_dims)

    def check(batch, kstate):
        state = jax.random.normal(kstate, (batch, observation_dim), dtype=jnp.float32)
        mu, std = actornet_forward(state, params)
        mu, std = jax.block_until_ready(mu), jax.block_until_ready(std)
        mu_ref, std_ref = actornet_reference(state, params, action_dim)
        assert mu.shape == (batch, action_dim) and std.shape == (batch, action_dim)
        assert jnp.allclose(mu, mu_ref, atol=1e-5, rtol=1e-5)
        assert jnp.allclose(std, std_ref, atol=1e-5, rtol=1e-5)

    check(8, k_s1)      # single tile, tiny batch
    check(384, k_s2)    # multi-tile (grid=3), even tiles, exercises the parallel batch axis
    check(300, k_s3)    # multi-tile with a partial final tile (clipped writeback)

    print("KERNEL_OK")
</pallas_src>

<mosaic_0001>
module attributes {stable_mosaic.version = 11 : i64} {
  func.func @_actornet_kernel(%arg0: i32, %arg1: memref<8x16xf32, #tpu.memory_space<vmem>>, %arg2: memref<32x16xf32, #tpu.memory_space<vmem>>, %arg3: memref<32x1xf32, #tpu.memory_space<vmem>>, %arg4: memref<32x32xf32, #tpu.memory_space<vmem>>, %arg5: memref<32x1xf32, #tpu.memory_space<vmem>>, %arg6: memref<8x32xf32, #tpu.memory_space<vmem>>, %arg7: memref<8x1xf32, #tpu.memory_space<vmem>>, %arg8: memref<8x8xf32, #tpu.memory_space<vmem>>) attributes {dimension_semantics = [#tpu.dimension_semantics<parallel>], iteration_bounds = array<i64: 1>, scalar_prefetch = 0 : i64, scratch_operands = 0 : i64, tpu.core_type = #tpu.core_type<tc>, window_params = [{transform_indices = @transform_0, window_bounds = array<i64: 8, 16>}, {pipeline_mode = #tpu.pipeline_mode<synchronous>, transform_indices = @transform_1, window_bounds = array<i64: 32, 16>}, {pipeline_mode = #tpu.pipeline_mode<synchronous>, transform_indices = @transform_2, window_bounds = array<i64: 32, 1>}, {pipeline_mode = #tpu.pipeline_mode<synchronous>, transform_indices = @transform_3, window_bounds = array<i64: 32, 32>}, {pipeline_mode = #tpu.pipeline_mode<synchronous>, transform_indices = @transform_4, window_bounds = array<i64: 32, 1>}, {pipeline_mode = #tpu.pipeline_mode<synchronous>, transform_indices = @transform_5, window_bounds = array<i64: 8, 32>}, {pipeline_mode = #tpu.pipeline_mode<synchronous>, transform_indices = @transform_6, window_bounds = array<i64: 8, 1>}, {transform_indices = @transform_7, window_bounds = array<i64: 8, 8>}]} {
    %c0 = arith.constant 0 : index
    %c0_0 = arith.constant 0 : index
    %0 = vector.load %arg1[%c0, %c0_0] : memref<8x16xf32, #tpu.memory_space<vmem>>, vector<8x16xf32>
    %c0_1 = arith.constant 0 : index
    %c0_2 = arith.constant 0 : index
    %1 = vector.load %arg2[%c0_1, %c0_2] : memref<32x16xf32, #tpu.memory_space<vmem>>, vector<32x16xf32>
    %cst = arith.constant dense<0.000000e+00> : vector<32x8xf32>
    %2 = tpu.matmul %1, %0, %cst {dimension_numbers = #tpu.dot_dimension_numbers<[1], [1], [0], [0], [0, 0, 1, 0], [], []>} : vector<32x16xf32>, vector<8x16xf32>, vector<32x8xf32> -> vector<32x8xf32>
    %c0_3 = arith.constant 0 : index
    %c0_4 = arith.constant 0 : index
    %3 = vector.load %arg3[%c0_3, %c0_4] : memref<32x1xf32, #tpu.memory_space<vmem>>, vector<32x1xf32>
    %4 = vector.broadcast %3 : vector<32x1xf32> to vector<32x8xf32>
    %5 = arith.addf %2, %4 : vector<32x8xf32>
    %cst_5 = arith.constant 0.000000e+00 : f32
    %6 = vector.broadcast %cst_5 : f32 to vector<32x8xf32>
    %7 = arith.maximumf %5, %6 : vector<32x8xf32>
    %c0_6 = arith.constant 0 : index
    %c0_7 = arith.constant 0 : index
    %8 = vector.load %arg4[%c0_6, %c0_7] : memref<32x32xf32, #tpu.memory_space<vmem>>, vector<32x32xf32>
    %cst_8 = arith.constant dense<0.000000e+00> : vector<32x8xf32>
    %9 = tpu.matmul %8, %7, %cst_8 {dimension_numbers = #tpu.dot_dimension_numbers<[1], [0], [0], [1], [0, 0, 1, 1], [], []>} : vector<32x32xf32>, vector<32x8xf32>, vector<32x8xf32> -> vector<32x8xf32>
    %c0_9 = arith.constant 0 : index
    %c0_10 = arith.constant 0 : index
    %10 = vector.load %arg5[%c0_9, %c0_10] : memref<32x1xf32, #tpu.memory_space<vmem>>, vector<32x1xf32>
    %11 = vector.broadcast %10 : vector<32x1xf32> to vector<32x8xf32>
    %12 = arith.addf %9, %11 : vector<32x8xf32>
    %cst_11 = arith.constant 0.000000e+00 : f32
    %13 = vector.broadcast %cst_11 : f32 to vector<32x8xf32>
    %14 = arith.maximumf %12, %13 : vector<32x8xf32>
    %c0_12 = arith.constant 0 : index
    %c0_13 = arith.constant 0 : index
    %15 = vector.load %arg6[%c0_12, %c0_13] : memref<8x32xf32, #tpu.memory_space<vmem>>, vector<8x32xf32>
    %cst_14 = arith.constant dense<0.000000e+00> : vector<8x8xf32>
    %16 = tpu.matmul %15, %14, %cst_14 {dimension_numbers = #tpu.dot_dimension_numbers<[1], [0], [0], [1], [0, 0, 1, 1], [], []>} : vector<8x32xf32>, vector<32x8xf32>, vector<8x8xf32> -> vector<8x8xf32>
    %c0_15 = arith.constant 0 : index
    %c0_16 = arith.constant 0 : index
    %17 = vector.load %arg7[%c0_15, %c0_16] : memref<8x1xf32, #tpu.memory_space<vmem>>, vector<8x1xf32>
    %18 = vector.broadcast %17 : vector<8x1xf32> to vector<8x8xf32>
    %19 = arith.addf %16, %18 : vector<8x8xf32>
    %20 = tpu.iota {dimensions = array<i32: 0>} : vector<8x8xi32>
    %c4_i32 = arith.constant 4 : i32
    %21 = vector.broadcast %c4_i32 : i32 to vector<8x8xi32>
    %22 = arith.cmpi slt, %20, %21 : vector<8x8xi32>
    %23 = math.exp %19 : vector<8x8xf32>
    %24 = arith.select %22, %19, %23 : vector<8x8xi1>, vector<8x8xf32>
    %c0_17 = arith.constant 0 : index
    %c0_18 = arith.constant 0 : index
    %25 = vector.load %arg8[%c0_17, %c0_18] : memref<8x8xf32, #tpu.memory_space<vmem>>, vector<8x8xf32>
    tpu.vector_store %arg8[%c0_17, %c0_18], %24 {strides = array<i32>} : memref<8x8xf32, #tpu.memory_space<vmem>>, vector<8x8xf32>,
    return
  }
  func.func @transform_0(%arg0: i32) -> (i32, i32) {
    %c0_i32 = arith.constant 0 : i32
    %c0_i32_0 = arith.constant 0 : i32
    return %arg0, %c0_i32 : i32, i32
  }
  func.func @transform_1(%arg0: i32) -> (i32, i32) {
    %c0_i32 = arith.constant 0 : i32
    %c0_i32_0 = arith.constant 0 : i32
    %c0_i32_1 = arith.constant 0 : i32
    return %c0_i32, %c0_i32_0 : i32, i32
  }
  func.func @transform_2(%arg0: i32) -> (i32, i32) {
    %c0_i32 = arith.constant 0 : i32
    %c0_i32_0 = arith.constant 0 : i32
    %c0_i32_1 = arith.constant 0 : i32
    return %c0_i32, %c0_i32_0 : i32, i32
  }
  func.func @transform_3(%arg0: i32) -> (i32, i32) {
    %c0_i32 = arith.constant 0 : i32
    %c0_i32_0 = arith.constant 0 : i32
    %c0_i32_1 = arith.constant 0 : i32
    return %c0_i32, %c0_i32_0 : i32, i32
  }
  func.func @transform_4(%arg0: i32) -> (i32, i32) {
    %c0_i32 = arith.constant 0 : i32
    %c0_i32_0 = arith.constant 0 : i32
    %c0_i32_1 = arith.constant 0 : i32
    return %c0_i32, %c0_i32_0 : i32, i32
  }
  func.func @transform_5(%arg0: i32) -> (i32, i32) {
    %c0_i32 = arith.constant 0 : i32
    %c0_i32_0 = arith.constant 0 : i32
    %c0_i32_1 = arith.constant 0 : i32
    return %c0_i32, %c0_i32_0 : i32, i32
  }
  func.func @transform_6(%arg0: i32) -> (i32, i32) {
    %c0_i32 = arith.constant 0 : i32
    %c0_i32_0 = arith.constant 0 : i32
    %c0_i32_1 = arith.constant 0 : i32
    return %c0_i32, %c0_i32_0 : i32, i32
  }
  func.func @transform_7(%arg0: i32) -> (i32, i32) {
    %c0_i32 = arith.constant 0 : i32
    %c0_i32_0 = arith.constant 0 : i32
    return %c0_i32, %arg0 : i32, i32
  }
}

</mosaic_0001>

<llo_original>
// kernel: actornet_forward.1
$region0: #{actornet_forward.1}
  #allocation0 [shape = 'u32[]', space=smem, size = 0x4, offset = 0x4, fixed_abs, tag = 'smem constant byte address 0x4 - core index']
  #allocation1 [shape = 'u32[144,128]{1,0:T(1,128)}', space=vmem, size = 0x12000, scoped, tag = 'internal scratch']
  %s0 = inlined_call_operand.vmem [shape: f32[8,16], index: 0, kind: input, shape index: {}]
  %s1 = inlined_call_operand.vmem [shape: f32[32,16], index: 1, kind: input, shape index: {}]
  %s2 = inlined_call_operand.vmem [shape: f32[32,1], index: 2, kind: input, shape index: {}]
  %s3 = inlined_call_operand.vmem [shape: f32[32,32], index: 3, kind: input, shape index: {}]
  %s4 = inlined_call_operand.vmem [shape: f32[32,1], index: 4, kind: input, shape index: {}]
  %s5 = inlined_call_operand.vmem [shape: f32[8,32], index: 5, kind: input, shape index: {}]
  %s6 = inlined_call_operand.vmem [shape: f32[8,1], index: 6, kind: input, shape index: {}]
  %s7 = inlined_call_operand.vmem [shape: f32[8,8], index: 7, kind: output, shape index: {}]
  %s8 = sld [smem:[#allocation0]]
  $region38: #{actornet_forward.1} parent=0
    _
  %s10 = ssub.s32 1, %s8
  %s11 = scalar_select 0, %s10, %s8
  // Predicated region
  $region2: #{actornet_forward.1} parent=0 // pred_check
    _
  $region3: #{actornet_forward.1} parent=0 // pred_check_branch
    %13 = sbr.rel (0) target = $region5
  $region4: #{actornet_forward.1} parent=0 // pred_region
    _
  $region5: #{actornet_forward.1} parent=0 // pred_fallthru
    _
  // Predicated region
  $region6: #{actornet_forward.1} parent=0 // pred_check
    _
  $region7: #{actornet_forward.1} parent=0 // pred_check_branch
    %15 = sbr.rel (0) target = $region9
  $region8: #{actornet_forward.1} parent=0 // pred_region
    _
  $region9: #{actornet_forward.1} parent=0 // pred_fallthru
    _
  // Predicated region
  $region10: #{actornet_forward.1} parent=0 // pred_check
    _
  $region11: #{actornet_forward.1} parent=0 // pred_check_branch
    %17 = sbr.rel (0) target = $region13
  $region12: #{actornet_forward.1} parent=0 // pred_region
    _
  $region13: #{actornet_forward.1} parent=0 // pred_fallthru
    _
  // Predicated region
  $region14: #{actornet_forward.1} parent=0 // pred_check
    _
  $region15: #{actornet_forward.1} parent=0 // pred_check_branch
    %19 = sbr.rel (0) target = $region17
  $region16: #{actornet_forward.1} parent=0 // pred_region
    _
  $region17: #{actornet_forward.1} parent=0 // pred_fallthru
    _
  // Predicated region
  $region18: #{actornet_forward.1} parent=0 // pred_check
    _
  $region19: #{actornet_forward.1} parent=0 // pred_check_branch
    %21 = sbr.rel (0) target = $region21
  $region20: #{actornet_forward.1} parent=0 // pred_region
    _
  $region21: #{actornet_forward.1} parent=0 // pred_fallthru
    _
  // Predicated region
  $region22: #{actornet_forward.1} parent=0 // pred_check
    _
  $region23: #{actornet_forward.1} parent=0 // pred_check_branch
    %23 = sbr.rel (0) target = $region25
  $region24: #{actornet_forward.1} parent=0 // pred_region
    _
  $region25: #{actornet_forward.1} parent=0 // pred_fallthru
    _
  // Predicated region
  $region26: #{actornet_forward.1} parent=0 // pred_check
    _
  $region27: #{actornet_forward.1} parent=0 // pred_check_branch
    %25 = sbr.rel (0) target = $region29
  $region28: #{actornet_forward.1} parent=0 // pred_region
    _
  $region29: #{actornet_forward.1} parent=0 // pred_fallthru
    _
  %v26 = vld [vmem:[%s0] sm:$0xff]
  %v27 = vld [vmem:[%s1] sm:$0xff]
  %v28 = vld [vmem:[%s1 + $0x8] sm:$0xff]
  %v29 = vld [vmem:[%s1 + $0x10] sm:$0xff]
  %v30 = vld [vmem:[%s1 + $0x18] sm:$0xff]
  %v31 = vld [vmem:[%s2] sm:$0xff]
  %v32 = vld [vmem:[%s2 + $0x8] sm:$0xff]
  %v33 = vld [vmem:[%s2 + $0x10] sm:$0xff]
  %v34 = vld [vmem:[%s2 + $0x18] sm:$0xff]
  %36 = vset.pattern.permute.xlu0 0
  %37 = vperm.xlu0 %36, %v31
  %v38 = vpop.permute.xlu0 %37
  %41 = vset.pattern.permute.xlu0 0
  %42 = vperm.xlu0 %41, %v32
  %v43 = vpop.permute.xlu0 %42
  %46 = vset.pattern.permute.xlu0 0
  %47 = vperm.xlu0 %46, %v33
  %v48 = vpop.permute.xlu0 %47
  %51 = vset.pattern.permute.xlu0 0
  %52 = vperm.xlu0 %51, %v34
  %v53 = vpop.permute.xlu0 %52
  %vm55 = vcmask 130048
  %v57 = vsel %vm55, %v27, 0
  %v60 = vsel %vm55, %v28, 0
  %v63 = vsel %vm55, %v29, 0
  %v66 = vsel %vm55, %v30, 0
  %v69 = vsel %vm55, %v26, 0
  %71 = vmatprep.subr.mxu0 0.0
  %72 = vmatpush1.xpose.msra.mxu0 %v69
  %73 = vmatprep.subr.mxu0 0.0
  %74 = vmatpush1.xpose.msra.mxu0 0.0
  %75 = vmatprep.subr.mxu0 0.0
  %76 = vmatpush1.xpose.msra.mxu0 0.0
  %77 = vmatprep.subr.mxu0 0.0
  %78 = vmatpush1.xpose.msra.mxu0 0.0
  %79 = vmatprep.subr.mxu0 0.0
  %80 = vmatpush1.xpose.msra.mxu0 0.0
  %81 = vmatprep.subr.mxu0 0.0
  %82 = vmatpush1.xpose.msra.mxu0 0.0
  %83 = vmatprep.subr.mxu0 0.0
  %84 = vmatpush1.xpose.msra.mxu0 0.0
  %85 = vmatprep.subr.mxu0 0.0
  %86 = vmatpush1.xpose.msra.mxu0 0.0
  %87 = vmatprep.subr.mxu0 0.0
  %88 = vmatpush1.xpose.msra.mxu0 0.0
  %89 = vmatprep.subr.mxu0 0.0
  %90 = vmatpush1.xpose.msra.mxu0 0.0
  %91 = vmatprep.subr.mxu0 0.0
  %92 = vmatpush1.xpose.msra.mxu0 0.0
  %93 = vmatprep.subr.mxu0 0.0
  %94 = vmatpush1.xpose.msra.mxu0 0.0
  %95 = vmatprep.subr.mxu0 0.0
  %96 = vmatpush1.xpose.msra.mxu0 0.0
  %97 = vmatprep.subr.mxu0 0.0
  %98 = vmatpush1.xpose.msra.mxu0 0.0
  %99 = vmatprep.subr.mxu0 0.0
  %100 = vmatpush1.xpose.msra.mxu0 0.0
  %101 = vmatprep.subr.mxu0 0.0
  %102 = vmatpush1.xpose.msra.mxu0 0.0
  %103 = vmatprep.subr.mxu0 0.0
  %104 = vmatpush1.xpose.msra.mxu0 0.0
  %105 = vmatprep.subr.mxu0 0.0
  %106 = vmatpush1.xpose.msra.mxu0 0.0
  %107 = vmatprep.subr.mxu0 0.0
  %108 = vmatpush1.xpose.msra.mxu0 0.0
  %109 = vmatprep.subr.mxu0 0.0
  %110 = vmatpush1.xpose.msra.mxu0 0.0
  %111 = vmatprep.subr.mxu0 0.0
  %112 = vmatpush1.xpose.msra.mxu0 0.0
  %113 = vmatprep.subr.mxu0 0.0
  %114 = vmatpush1.xpose.msra.mxu0 0.0
  %115 = vmatprep.subr.mxu0 0.0
  %116 = vmatpush1.xpose.msra.mxu0 0.0
  %117 = vmatprep.subr.mxu0 0.0
  %118 = vmatpush1.xpose.msra.mxu0 0.0
  %119 = vmatprep.subr.mxu0 0.0
  %120 = vmatpush1.xpose.msra.mxu0 0.0
  %121 = vmatprep.subr.mxu0 0.0
  %122 = vmatpush1.xpose.msra.mxu0 0.0
  %123 = vmatprep.subr.mxu0 0.0
  %124 = vmatpush1.xpose.msra.mxu0 0.0
  %125 = vmatprep.subr.mxu0 0.0
  %126 = vmatpush1.xpose.msra.mxu0 0.0
  %127 = vmatprep.subr.mxu0 0.0
  %128 = vmatpush1.xpose.msra.mxu0 0.0
  %129 = vmatprep.subr.mxu0 0.0
  %130 = vmatpush1.xpose.msra.mxu0 0.0
  %131 = vmatprep.subr.mxu0 0.0
  %132 = vmatpush1.xpose.msra.mxu0 0.0
  %133 = vmatprep.subr.mxu0 0.0
  %134 = vmatpush1.xpose.msra.mxu0 0.0
  %135 = vmatprep.mubr.f32.mxu0 0.0
  %136 = vmatmul.mubr.f32.gmra.mrb[0].mxu0 %v57
  %v137 = vpop.f32.mrb[0].mxu0
  %v138 = vadd.f32 %v38, %v137
  %v139 = vpop.f32.mrb[0].mxu0
  %140 = vmatprep.mubr.f32.mxu0 0.0
  %141 = vmatmul.mubr.f32.gmra.mrb[0].mxu0 %v60
  %v142 = vpop.f32.mrb[0].mxu0
  %v143 = vadd.f32 %v43, %v142
  %v144 = vpop.f32.mrb[0].mxu0
  %145 = vmatprep.mubr.f32.mxu0 0.0
  %146 = vmatmul.mubr.f32.gmra.mrb[0].mxu0 %v63
  %v147 = vpop.f32.mrb[0].mxu0
  %v148 = vadd.f32 %v48, %v147
  %v149 = vpop.f32.mrb[0].mxu0
  %150 = vmatprep.mubr.f32.mxu0 0.0
  %151 = vmatmul.mubr.f32.gmra.mrb[0].mxu0 %v66
  %v152 = vpop.f32.mrb[0].mxu0
  %v153 = vadd.f32 %v53, %v152
  %v154 = vpop.f32.mrb[0].mxu0
  %155 = vdwg.mxu0
  %v156 = vmax.f32 %v138, 0.0
  %v157 = vmax.f32 %v143, 0.0
  %v158 = vmax.f32 %v148, 0.0
  %v159 = vmax.f32 %v153, 0.0
  %v160 = vld [vmem:[%s3] sm:$0xff]
  %v161 = vld [vmem:[%s3 + $0x8] sm:$0xff]
  %v162 = vld [vmem:[%s3 + $0x10] sm:$0xff]
  %v163 = vld [vmem:[%s3 + $0x18] sm:$0xff]
  %v164 = vld [vmem:[%s4] sm:$0xff]
  %v165 = vld [vmem:[%s4 + $0x8] sm:$0xff]
  %v166 = vld [vmem:[%s4 + $0x10] sm:$0xff]
  %v167 = vld [vmem:[%s4 + $0x18] sm:$0xff]
  %169 = vset.pattern.permute.xlu0 0
  %170 = vperm.xlu0 %169, %v164
  %v171 = vpop.permute.xlu0 %170
  %174 = vset.pattern.permute.xlu0 0
  %175 = vperm.xlu0 %174, %v165
  %v176 = vpop.permute.xlu0 %175
  %179 = vset.pattern.permute.xlu0 0
  %180 = vperm.xlu0 %179, %v166
  %v181 = vpop.permute.xlu0 %180
  %184 = vset.pattern.permute.xlu0 0
  %185 = vperm.xlu0 %184, %v167
  %v186 = vpop.permute.xlu0 %185
  %vm188 = vcmask 261120
  %v190 = vsel %vm188, %v160, 0
  %v193 = vsel %vm188, %v161, 0
  %v196 = vsel %vm188, %v162, 0
  %v199 = vsel %vm188, %v163, 0
  %201 = vmatprep.subr.mxu0 0.0
  %202 = vmatpush1.msra.mxu0 %v156
  %203 = vmatprep.subr.mxu0 0.0
  %204 = vmatpush1.msra.mxu0 %v157
  %205 = vmatprep.subr.mxu0 0.0
  %206 = vmatpush1.msra.mxu0 %v158
  %207 = vmatprep.subr.mxu0 0.0
  %208 = vmatpush1.msra.mxu0 %v159
  %209 = vmatprep.subr.mxu0 0.0
  %210 = vmatpush1.msra.mxu0 0.0
  %211 = vmatprep.subr.mxu0 0.0
  %212 = vmatpush1.msra.mxu0 0.0
  %213 = vmatprep.subr.mxu0 0.0
  %214 = vmatpush1.msra.mxu0 0.0
  %215 = vmatprep.subr.mxu0 0.0
  %216 = vmatpush1.msra.mxu0 0.0
  %217 = vmatprep.subr.mxu0 0.0
  %218 = vmatpush1.msra.mxu0 0.0
  %219 = vmatprep.subr.mxu0 0.0
  %220 = vmatpush1.msra.mxu0 0.0
  %221 = vmatprep.subr.mxu0 0.0
  %222 = vmatpush1.msra.mxu0 0.0
  %223 = vmatprep.subr.mxu0 0.0
  %224 = vmatpush1.msra.mxu0 0.0
  %225 = vmatprep.subr.mxu0 0.0
  %226 = vmatpush1.msra.mxu0 0.0
  %227 = vmatprep.subr.mxu0 0.0
  %228 = vmatpush1.msra.mxu0 0.0
  %229 = vmatprep.subr.mxu0 0.0
  %230 = vmatpush1.msra.mxu0 0.0
  %231 = vmatprep.subr.mxu0 0.0
  %232 = vmatpush1.msra.mxu0 0.0
  %233 = vmatprep.subr.mxu0 0.0
  %234 = vmatpush1.msra.mxu0 0.0
  %235 = vmatprep.subr.mxu0 0.0
  %236 = vmatpush1.msra.mxu0 0.0
  %237 = vmatprep.subr.mxu0 0.0
  %238 = vmatpush1.msra.mxu0 0.0
  %239 = vmatprep.subr.mxu0 0.0
  %240 = vmatpush1.msra.mxu0 0.0
  %241 = vmatprep.subr.mxu0 0.0
  %242 = vmatpush1.msra.mxu0 0.0
  %243 = vmatprep.subr.mxu0 0.0
  %244 = vmatpush1.msra.mxu0 0.0
  %245 = vmatprep.subr.mxu0 0.0
  %246 = vmatpush1.msra.mxu0 0.0
  %247 = vmatprep.subr.mxu0 0.0
  %248 = vmatpush1.msra.mxu0 0.0
  %249 = vmatprep.subr.mxu0 0.0
  %250 = vmatpush1.msra.mxu0 0.0
  %251 = vmatprep.subr.mxu0 0.0
  %252 = vmatpush1.msra.mxu0 0.0
  %253 = vmatprep.subr.mxu0 0.0
  %254 = vmatpush1.msra.mxu0 0.0
  %255 = vmatprep.subr.mxu0 0.0
  %256 = vmatpush1.msra.mxu0 0.0
  %257 = vmatprep.subr.mxu0 0.0
  %258 = vmatpush1.msra.mxu0 0.0
  %259 = vmatprep.subr.mxu0 0.0
  %260 = vmatpush1.msra.mxu0 0.0
  %261 = vmatprep.subr.mxu0 0.0
  %262 = vmatpush1.msra.mxu0 0.0
  %263 = vmatprep.subr.mxu0 0.0
  %264 = vmatpush1.msra.mxu0 0.0
  %265 = vmatprep.mubr.f32.mxu0 0.0
  %266 = vmatmul.mubr.f32.gmra.mrb[0].mxu0 %v190
  %v267 = vpop.f32.mrb[0].mxu0
  %v268 = vadd.f32 %v171, %v267
  %v269 = vpop.f32.mrb[0].mxu0
  %270 = vmatprep.mubr.f32.mxu0 0.0
  %271 = vmatmul.mubr.f32.gmra.mrb[0].mxu0 %v193
  %v272 = vpop.f32.mrb[0].mxu0
  %v273 = vadd.f32 %v176, %v272
  %v274 = vpop.f32.mrb[0].mxu0
  %275 = vmatprep.mubr.f32.mxu0 0.0
  %276 = vmatmul.mubr.f32.gmra.mrb[0].mxu0 %v196
  %v277 = vpop.f32.mrb[0].mxu0
  %v278 = vadd.f32 %v181, %v277
  %v279 = vpop.f32.mrb[0].mxu0
  %280 = vmatprep.mubr.f32.mxu0 0.0
  %281 = vmatmul.mubr.f32.gmra.mrb[0].mxu0 %v199
  %v282 = vpop.f32.mrb[0].mxu0
  %v283 = vadd.f32 %v186, %v282
  %v284 = vpop.f32.mrb[0].mxu0
  %285 = vdwg.mxu0
  %v286 = vmax.f32 %v268, 0.0
  %v287 = vmax.f32 %v273, 0.0
  %v288 = vmax.f32 %v278, 0.0
  %v289 = vmax.f32 %v283, 0.0
  %v290 = vld [vmem:[%s5] sm:$0xff]
  %v291 = vld [vmem:[%s6] sm:$0xff]
  %293 = vset.pattern.permute.xlu0 0
  %294 = vperm.xlu0 %293, %v291
  %v295 = vpop.permute.xlu0 %294
  %v298 = vsel %vm188, %v290, 0
  %300 = vmatprep.subr.mxu0 0.0
  %301 = vmatpush1.msra.mxu0 %v286
  %302 = vmatprep.subr.mxu0 0.0
  %303 = vmatpush1.msra.mxu0 %v287
  %304 = vmatprep.subr.mxu0 0.0
  %305 = vmatpush1.msra.mxu0 %v288
  %306 = vmatprep.subr.mxu0 0.0
  %307 = vmatpush1.msra.mxu0 %v289
  %308 = vmatprep.subr.mxu0 0.0
  %309 = vmatpush1.msra.mxu0 0.0
  %310 = vmatprep.subr.mxu0 0.0
  %311 = vmatpush1.msra.mxu0 0.0
  %312 = vmatprep.subr.mxu0 0.0
  %313 = vmatpush1.msra.mxu0 0.0
  %314 = vmatprep.subr.mxu0 0.0
  %315 = vmatpush1.msra.mxu0 0.0
  %316 = vmatprep.subr.mxu0 0.0
  %317 = vmatpush1.msra.mxu0 0.0
  %318 = vmatprep.subr.mxu0 0.0
  %319 = vmatpush1.msra.mxu0 0.0
  %320 = vmatprep.subr.mxu0 0.0
  %321 = vmatpush1.msra.mxu0 0.0
  %322 = vmatprep.subr.mxu0 0.0
  %323 = vmatpush1.msra.mxu0 0.0
  %324 = vmatprep.subr.mxu0 0.0
  %325 = vmatpush1.msra.mxu0 0.0
  %326 = vmatprep.subr.mxu0 0.0
  %327 = vmatpush1.msra.mxu0 0.0
  %328 = vmatprep.subr.mxu0 0.0
  %329 = vmatpush1.msra.mxu0 0.0
  %330 = vmatprep.subr.mxu0 0.0
  %331 = vmatpush1.msra.mxu0 0.0
  %332 = vmatprep.subr.mxu0 0.0
  %333 = vmatpush1.msra.mxu0 0.0
  %334 = vmatprep.subr.mxu0 0.0
  %335 = vmatpush1.msra.mxu0 0.0
  %336 = vmatprep.subr.mxu0 0.0
  %337 = vmatpush1.msra.mxu0 0.0
  %338 = vmatprep.subr.mxu0 0.0
  %339 = vmatpush1.msra.mxu0 0.0
  %340 = vmatprep.subr.mxu0 0.0
  %341 = vmatpush1.msra.mxu0 0.0
  %342 = vmatprep.subr.mxu0 0.0
  %343 = vmatpush1.msra.mxu0 0.0
  %344 = vmatprep.subr.mxu0 0.0
  %345 = vmatpush1.msra.mxu0 0.0
  %346 = vmatprep.subr.mxu0 0.0
  %347 = vmatpush1.msra.mxu0 0.0
  %348 = vmatprep.subr.mxu0 0.0
  %349 = vmatpush1.msra.mxu0 0.0
  %350 = vmatprep.subr.mxu0 0.0
  %351 = vmatpush1.msra.mxu0 0.0
  %352 = vmatprep.subr.mxu0 0.0
  %353 = vmatpush1.msra.mxu0 0.0
  %354 = vmatprep.subr.mxu0 0.0
  %355 = vmatpush1.msra.mxu0 0.0
  %356 = vmatprep.subr.mxu0 0.0
  %357 = vmatpush1.msra.mxu0 0.0
  %358 = vmatprep.subr.mxu0 0.0
  %359 = vmatpush1.msra.mxu0 0.0
  %360 = vmatprep.subr.mxu0 0.0
  %361 = vmatpush1.msra.mxu0 0.0
  %362 = vmatprep.subr.mxu0 0.0
  %363 = vmatpush1.msra.mxu0 0.0
  %364 = vmatprep.mubr.f32.mxu0 0.0
  %365 = vmatmul.mubr.f32.gmra.mrb[0].mxu0 %v298
  %v366 = vpop.f32.mrb[0].mxu0
  %v367 = vadd.f32 %v295, %v366
  %v368 = vpop.f32.mrb[0].mxu0
  %369 = vdwg.mxu0
  %v370 = vlaneseq
  %v371 = vshrl.u32 %v370, 7
  %vm372 = vcmp.lt.s32.totalorder %v371, 4
  %v373 = vmul.f32 %v367, 1.442695
  %v374 = vpow.pop %v373
  %v375 = vsel %vm372, %v367, %v374
  %vm376 = vcmask 64512
  %377 = vst.msk [vmem:[%s7] sm:$0xff] %vm376, %v375
  // Predicated region
  $region30: #{actornet_forward.1} parent=0 // pred_check
    _
  $region31: #{actornet_forward.1} parent=0 // pred_check_branch
    %379 = sbr.rel (0) target = $region33
  $region32: #{actornet_forward.1} parent=0 // pred_region
    _
  $region33: #{actornet_forward.1} parent=0 // pred_fallthru
    _
  // Predicated region
  $region34: #{actornet_forward.1} parent=0 // pred_check
    _
  $region35: #{actornet_forward.1} parent=0 // pred_check_branch
    %381 = sbr.rel (0) target = $region37
  $region36: #{actornet_forward.1} parent=0 // pred_region
    _
  $region37: #{actornet_forward.1} parent=0 // pred_fallthru
    _

</llo_original>
